<compile_context>
chip_gen: v6e
topology: v6e:2x2x1
jax: 0.10.0
libtpu: 0.0.40
codegen_flags: <defaults>
</compile_context>

<pallas_src>
import functools

import jax
import jax.numpy as jnp
from jax.experimental import pallas as pl
from jax.experimental.pallas import tpu as pltpu

LANE = 128


def _comgnn_kernel(adj_ref, x_ref, w1_ref, b1_ref, w2_ref, b2_ref, out_ref,
                   *, n_layers, eps, compute_dtype):
    """Single grid step: all GIN layers unrolled, activation carried as a value."""
    adj = adj_ref[...]                       # (N, N) in compute_dtype, resident in VMEM
    h = x_ref[...]                           # (N, P) f32

    for i in range(n_layers):                # static unrolled loop (n_layers is small)
        # GIN aggregation: sum_j A[i, j] * h_j  (dense adjacency matmul on the MXU).
        agg = jnp.dot(adj, h.astype(compute_dtype), preferred_element_type=jnp.float32)
        if eps == 0.0:                       # static Python float -> resolved at trace time
            z = h + agg
        else:
            z = (1.0 + eps) * h + agg

        # MLP: Linear -> ReLU -> Linear (BatchNorm already folded into W2/b2 host-side).
        h1 = jnp.dot(z.astype(compute_dtype), w1_ref[i],
                     preferred_element_type=jnp.float32) + b1_ref[i]
        h1 = jnp.maximum(h1, 0.0)
        h2 = jnp.dot(h1.astype(compute_dtype), w2_ref[i],
                     preferred_element_type=jnp.float32) + b2_ref[i]

        # ReLU (BN folded); dropout is identity in eval mode.
        h = jnp.maximum(h2, 0.0)
        out_ref[i] = h                       # lane-dense (128-wide) store of this layer


def _pad_to(a, shape, value=0.0):
    pads = [(0, s - d) for s, d in zip(shape, a.shape)]
    return jnp.pad(a, pads, constant_values=value)


def build_dense_adjacency(edge_index, edge_weight, num_nodes):
    """Dense A[dst, src] = w, matching PyG source->target message flow."""
    src = edge_index[0]
    dst = edge_index[1]
    if edge_weight is None:
        edge_weight = jnp.ones(edge_index.shape[1], dtype=jnp.float32)
    adj = jnp.zeros((num_nodes, num_nodes), dtype=jnp.float32)
    return adj.at[dst, src].add(edge_weight)


def init_comgnn_params(key, in_dim, emb_dim, n_layers):
    """Random Linear weights and *non-trivial* BN buffers so the BN fold is really tested."""
    params = []
    for i in range(n_layers):
        fi = in_dim if i == 0 else emb_dim
        key, k1, k2, k3, k4, k5, k6, k7, k8 = jax.random.split(key, 9)
        params.append({
            "w1": jax.random.normal(k1, (fi, emb_dim), jnp.float32) * 0.1,
            "b1": jax.random.normal(k2, (1, emb_dim), jnp.float32) * 0.05,
            "w2": jax.random.normal(k3, (emb_dim, emb_dim), jnp.float32) * 0.1,
            "b2": jax.random.normal(k4, (1, emb_dim), jnp.float32) * 0.05,
            "gamma": jax.random.uniform(k5, (1, emb_dim), jnp.float32, minval=0.5, maxval=1.5),
            "beta": jax.random.normal(k6, (1, emb_dim), jnp.float32) * 0.1,
            "mean": jax.random.normal(k7, (1, emb_dim), jnp.float32) * 0.1,
            "var": jax.random.uniform(k8, (1, emb_dim), jnp.float32, minval=0.5, maxval=1.5),
        })
    return params


def comgnn_forward(x, edge_index, params, edge_weight=None, eps=0.0,
                   compute_dtype=jnp.bfloat16):
    """Fused ComGNN forward (eval mode). Returns hs[1:], one [N, emb_dim] array per layer."""
    n, in_dim = x.shape
    emb = params[0]["w2"].shape[1]
    n_layers = len(params)
    # Pad the feature axis to a full lane multiple (>= 128) -> lane-dense compute & stores.
    p = LANE * pl.cdiv(max(in_dim, emb), LANE)

    adj = build_dense_adjacency(edge_index, edge_weight, n).astype(compute_dtype)
    x_p = _pad_to(x.astype(jnp.float32), (n, p))

    # Fold eval-mode BatchNorm into W2/b2, then zero-pad and stack per-layer params.
    # Padded channels stay exactly zero through the whole stack (zero weight rows/cols,
    # zero biases), so stripping the lane padding at the end recovers the exact result.
    w1s, b1s, w2s, b2s = [], [], [], []
    for q in params:
        inv_std = 1.0 / jnp.sqrt(q["var"] + 1e-5)
        scale = q["gamma"] * inv_std                    # (1, emb), per output channel
        w2f = q["w2"] * scale                           # scale each output column
        b2f = (q["b2"] - q["mean"]) * scale + q["beta"]
        w1s.append(_pad_to(q["w1"], (p, p)))
        b1s.append(_pad_to(q["b1"], (1, p)))
        w2s.append(_pad_to(w2f, (p, p)))
        b2s.append(_pad_to(b2f, (1, p)))
    w1s = jnp.stack(w1s).astype(compute_dtype)          # (L, P, P)  MXU operand dtype
    b1s = jnp.stack(b1s).astype(jnp.float32)            # (L, 1, P)  biases stay f32
    w2s = jnp.stack(w2s).astype(compute_dtype)
    b2s = jnp.stack(b2s).astype(jnp.float32)

    kernel = functools.partial(_comgnn_kernel, n_layers=n_layers, eps=float(eps),
                               compute_dtype=compute_dtype)

    # Raise the scoped VMEM limit only when the resident working set needs it.
    out_nbytes = n_layers * n * p * 4
    resident = sum(int(a.size) * a.dtype.itemsize for a in (adj, x_p, w1s, b1s, w2s, b2s))
    vmem_need = 2 * resident + 2 * out_nbytes + (4 << 20)
    cp_kwargs = dict(dimension_semantics=("arbitrary",))
    if vmem_need > (16 << 20):
        cp_kwargs["vmem_limit_bytes"] = int(min(vmem_need, 100 << 20))

    out = pl.pallas_call(
        kernel,
        out_shape=jax.ShapeDtypeStruct((n_layers, n, p), jnp.float32),
        grid=(1,),
        in_specs=[
            pl.BlockSpec((n, n), lambda i: (0, 0)),                 # adjacency (resident)
            pl.BlockSpec((n, p), lambda i: (0, 0)),                 # padded input features
            pl.BlockSpec((n_layers, p, p), lambda i: (0, 0, 0)),    # W1 (all layers)
            pl.BlockSpec((n_layers, 1, p), lambda i: (0, 0, 0)),    # b1
            pl.BlockSpec((n_layers, p, p), lambda i: (0, 0, 0)),    # W2 (BN-folded)
            pl.BlockSpec((n_layers, 1, p), lambda i: (0, 0, 0)),    # b2 (BN-folded)
        ],
        out_specs=pl.BlockSpec((n_layers, n, p), lambda i: (0, 0, 0)),
        compiler_params=pltpu.CompilerParams(**cp_kwargs),
    )(adj, x_p, w1s, b1s, w2s, b2s)

    # Strip the lane padding back to the real embedding width.
    return [out[i, :, :emb] for i in range(n_layers)]


def _reference_forward(x, edge_index, params, edge_weight=None, eps=0.0):
    """Pure-JAX reference with explicit (unfolded) BatchNorm, highest-precision matmuls."""
    hi = jax.lax.Precision.HIGHEST
    adj = build_dense_adjacency(edge_index, edge_weight, x.shape[0])
    hs = [x]
    for q in params:
        z = (1.0 + eps) * hs[-1] + jnp.dot(adj, hs[-1], precision=hi)
        h1 = jnp.maximum(jnp.dot(z, q["w1"], precision=hi) + q["b1"], 0.0)
        h2 = jnp.dot(h1, q["w2"], precision=hi) + q["b2"]
        bn = (h2 - q["mean"]) / jnp.sqrt(q["var"] + 1e-5) * q["gamma"] + q["beta"]
        hs.append(jnp.maximum(bn, 0.0))
    return hs[1:]


if __name__ == "__main__":
    N_NODES, IN_DIM, EMB_DIM, N_LAYERS, N_EDGES = 32, 16, 32, 2, 64

    key = jax.random.PRNGKey(0)
    kx, ke_src, ke_dst, kw, kp = jax.random.split(key, 5)

    x = jax.random.normal(kx, (N_NODES, IN_DIM), jnp.float32)
    edge_index = jnp.stack([
        jax.random.randint(ke_src, (N_EDGES,), 0, N_NODES),
        jax.random.randint(ke_dst, (N_EDGES,), 0, N_NODES),
    ]).astype(jnp.int32)
    edge_weight = jax.random.uniform(kw, (N_EDGES,), jnp.float32)

    params = init_comgnn_params(kp, IN_DIM, EMB_DIM, N_LAYERS)
    refs = _reference_forward(x, edge_index, params, edge_weight)

    # 1) Strict-precision path (f32 MXU operands): validates fusion + BN fold exactly.
    outs_f32 = comgnn_forward(x, edge_index, params, edge_weight,
                              compute_dtype=jnp.float32)
    outs_f32 = [jax.block_until_ready(o) for o in outs_f32]
    for o, r in zip(outs_f32, refs):
        assert o.shape == (N_NODES, EMB_DIM)
        assert jnp.allclose(o, r, atol=1e-4, rtol=1e-4)

    # 2) Perf path (default): bf16 MXU operands, f32 accumulation.
    outs_bf16 = comgnn_forward(x, edge_index, params, edge_weight)
    outs_bf16 = [jax.block_until_ready(o) for o in outs_bf16]
    for o, r in zip(outs_bf16, refs):
        assert o.shape == (N_NODES, EMB_DIM)
        assert jnp.allclose(o, r, atol=5e-2, rtol=5e-2)

    print("KERNEL_OK")
</pallas_src>

<mosaic_0001>
module attributes {stable_mosaic.version = 11 : i64} {
  func.func @_comgnn_kernel(%arg0: i32, %arg1: memref<32x32xf32, #tpu.memory_space<vmem>>, %arg2: memref<32x128xf32, #tpu.memory_space<vmem>>, %arg3: memref<2x128x128xf32, #tpu.memory_space<vmem>>, %arg4: memref<2x1x128xf32, #tpu.memory_space<vmem>>, %arg5: memref<2x128x128xf32, #tpu.memory_space<vmem>>, %arg6: memref<2x1x128xf32, #tpu.memory_space<vmem>>, %arg7: memref<2x32x128xf32, #tpu.memory_space<vmem>>) attributes {dimension_semantics = [#tpu.dimension_semantics<arbitrary>], iteration_bounds = array<i64: 1>, scalar_prefetch = 0 : i64, scratch_operands = 0 : i64, tpu.core_type = #tpu.core_type<tc>, window_params = [{pipeline_mode = #tpu.pipeline_mode<synchronous>, transform_indices = @transform_0, window_bounds = array<i64: 32, 32>}, {pipeline_mode = #tpu.pipeline_mode<synchronous>, transform_indices = @transform_1, window_bounds = array<i64: 32, 128>}, {pipeline_mode = #tpu.pipeline_mode<synchronous>, transform_indices = @transform_2, window_bounds = array<i64: 2, 128, 128>}, {pipeline_mode = #tpu.pipeline_mode<synchronous>, transform_indices = @transform_3, window_bounds = array<i64: 2, 1, 128>}, {pipeline_mode = #tpu.pipeline_mode<synchronous>, transform_indices = @transform_4, window_bounds = array<i64: 2, 128, 128>}, {pipeline_mode = #tpu.pipeline_mode<synchronous>, transform_indices = @transform_5, window_bounds = array<i64: 2, 1, 128>}, {pipeline_mode = #tpu.pipeline_mode<synchronous>, transform_indices = @transform_6, window_bounds = array<i64: 2, 32, 128>}]} {
    %c0 = arith.constant 0 : index
    %c0_0 = arith.constant 0 : index
    %0 = vector.load %arg1[%c0, %c0_0] : memref<32x32xf32, #tpu.memory_space<vmem>>, vector<32x32xf32>
    %c0_1 = arith.constant 0 : index
    %c0_2 = arith.constant 0 : index
    %1 = vector.load %arg2[%c0_1, %c0_2] : memref<32x128xf32, #tpu.memory_space<vmem>>, vector<32x128xf32>
    %cst = arith.constant dense<0.000000e+00> : vector<32x128xf32>
    %2 = tpu.matmul %0, %1, %cst {dimension_numbers = #tpu.dot_dimension_numbers<[1], [0], [0], [1], [0, 0, 1, 1], [], []>} : vector<32x32xf32>, vector<32x128xf32>, vector<32x128xf32> -> vector<32x128xf32>
    %3 = arith.addf %1, %2 : vector<32x128xf32>
    %c0_3 = arith.constant 0 : index
    %c0_4 = arith.constant 0 : index
    %c0_5 = arith.constant 0 : index
    %4 = vector.load %arg3[%c0_3, %c0_4, %c0_5] : memref<2x128x128xf32, #tpu.memory_space<vmem>>, vector<1x128x128xf32>
    %5 = vector.shape_cast %4 : vector<1x128x128xf32> to vector<128x128xf32>
    %cst_6 = arith.constant dense<0.000000e+00> : vector<32x128xf32>
    %6 = tpu.matmul %3, %5, %cst_6 {dimension_numbers = #tpu.dot_dimension_numbers<[1], [0], [0], [1], [0, 0, 1, 1], [], []>} : vector<32x128xf32>, vector<128x128xf32>, vector<32x128xf32> -> vector<32x128xf32>
    %c0_7 = arith.constant 0 : index
    %c0_8 = arith.constant 0 : index
    %c0_9 = arith.constant 0 : index
    %7 = vector.load %arg4[%c0_7, %c0_8, %c0_9] : memref<2x1x128xf32, #tpu.memory_space<vmem>>, vector<1x1x128xf32>
    %8 = vector.shape_cast %7 : vector<1x1x128xf32> to vector<1x128xf32>
    %9 = vector.broadcast %8 : vector<1x128xf32> to vector<32x128xf32>
    %10 = arith.addf %6, %9 : vector<32x128xf32>
    %cst_10 = arith.constant 0.000000e+00 : f32
    %11 = vector.broadcast %cst_10 : f32 to vector<32x128xf32>
    %12 = arith.maximumf %10, %11 : vector<32x128xf32>
    %c0_11 = arith.constant 0 : index
    %c0_12 = arith.constant 0 : index
    %c0_13 = arith.constant 0 : index
    %13 = vector.load %arg5[%c0_11, %c0_12, %c0_13] : memref<2x128x128xf32, #tpu.memory_space<vmem>>, vector<1x128x128xf32>
    %14 = vector.shape_cast %13 : vector<1x128x128xf32> to vector<128x128xf32>
    %cst_14 = arith.constant dense<0.000000e+00> : vector<32x128xf32>
    %15 = tpu.matmul %12, %14, %cst_14 {dimension_numbers = #tpu.dot_dimension_numbers<[1], [0], [0], [1], [0, 0, 1, 1], [], []>} : vector<32x128xf32>, vector<128x128xf32>, vector<32x128xf32> -> vector<32x128xf32>
    %c0_15 = arith.constant 0 : index
    %c0_16 = arith.constant 0 : index
    %c0_17 = arith.constant 0 : index
    %16 = vector.load %arg6[%c0_15, %c0_16, %c0_17] : memref<2x1x128xf32, #tpu.memory_space<vmem>>, vector<1x1x128xf32>
    %17 = vector.shape_cast %16 : vector<1x1x128xf32> to vector<1x128xf32>
    %18 = vector.broadcast %17 : vector<1x128xf32> to vector<32x128xf32>
    %19 = arith.addf %15, %18 : vector<32x128xf32>
    %cst_18 = arith.constant 0.000000e+00 : f32
    %20 = vector.broadcast %cst_18 : f32 to vector<32x128xf32>
    %21 = arith.maximumf %19, %20 : vector<32x128xf32>
    %c0_19 = arith.constant 0 : index
    %c0_20 = arith.constant 0 : index
    %c0_21 = arith.constant 0 : index
    %22 = vector.load %arg7[%c0_19, %c0_20, %c0_21] : memref<2x32x128xf32, #tpu.memory_space<vmem>>, vector<1x32x128xf32>
    %23 = vector.shape_cast %22 : vector<1x32x128xf32> to vector<32x128xf32>
    %24 = vector.shape_cast %21 : vector<32x128xf32> to vector<1x32x128xf32>
    tpu.vector_store %arg7[%c0_19, %c0_20, %c0_21], %24 {strides = array<i32>} : memref<2x32x128xf32, #tpu.memory_space<vmem>>, vector<1x32x128xf32>,
    %cst_22 = arith.constant dense<0.000000e+00> : vector<32x128xf32>
    %25 = tpu.matmul %0, %21, %cst_22 {dimension_numbers = #tpu.dot_dimension_numbers<[1], [0], [0], [1], [0, 0, 1, 1], [], []>} : vector<32x32xf32>, vector<32x128xf32>, vector<32x128xf32> -> vector<32x128xf32>
    %26 = arith.addf %21, %25 : vector<32x128xf32>
    %c1 = arith.constant 1 : index
    %c0_23 = arith.constant 0 : index
    %c0_24 = arith.constant 0 : index
    %27 = vector.load %arg3[%c1, %c0_23, %c0_24] : memref<2x128x128xf32, #tpu.memory_space<vmem>>, vector<1x128x128xf32>
    %28 = vector.shape_cast %27 : vector<1x128x128xf32> to vector<128x128xf32>
    %cst_25 = arith.constant dense<0.000000e+00> : vector<32x128xf32>
    %29 = tpu.matmul %26, %28, %cst_25 {dimension_numbers = #tpu.dot_dimension_numbers<[1], [0], [0], [1], [0, 0, 1, 1], [], []>} : vector<32x128xf32>, vector<128x128xf32>, vector<32x128xf32> -> vector<32x128xf32>
    %c1_26 = arith.constant 1 : index
    %c0_27 = arith.constant 0 : index
    %c0_28 = arith.constant 0 : index
    %30 = vector.load %arg4[%c1_26, %c0_27, %c0_28] : memref<2x1x128xf32, #tpu.memory_space<vmem>>, vector<1x1x128xf32>
    %31 = vector.shape_cast %30 : vector<1x1x128xf32> to vector<1x128xf32>
    %32 = vector.broadcast %31 : vector<1x128xf32> to vector<32x128xf32>
    %33 = arith.addf %29, %32 : vector<32x128xf32>
    %cst_29 = arith.constant 0.000000e+00 : f32
    %34 = vector.broadcast %cst_29 : f32 to vector<32x128xf32>
    %35 = arith.maximumf %33, %34 : vector<32x128xf32>
    %c1_30 = arith.constant 1 : index
    %c0_31 = arith.constant 0 : index
    %c0_32 = arith.constant 0 : index
    %36 = vector.load %arg5[%c1_30, %c0_31, %c0_32] : memref<2x128x128xf32, #tpu.memory_space<vmem>>, vector<1x128x128xf32>
    %37 = vector.shape_cast %36 : vector<1x128x128xf32> to vector<128x128xf32>
    %cst_33 = arith.constant dense<0.000000e+00> : vector<32x128xf32>
    %38 = tpu.matmul %35, %37, %cst_33 {dimension_numbers = #tpu.dot_dimension_numbers<[1], [0], [0], [1], [0, 0, 1, 1], [], []>} : vector<32x128xf32>, vector<128x128xf32>, vector<32x128xf32> -> vector<32x128xf32>
    %c1_34 = arith.constant 1 : index
    %c0_35 = arith.constant 0 : index
    %c0_36 = arith.constant 0 : index
    %39 = vector.load %arg6[%c1_34, %c0_35, %c0_36] : memref<2x1x128xf32, #tpu.memory_space<vmem>>, vector<1x1x128xf32>
    %40 = vector.shape_cast %39 : vector<1x1x128xf32> to vector<1x128xf32>
    %41 = vector.broadcast %40 : vector<1x128xf32> to vector<32x128xf32>
    %42 = arith.addf %38, %41 : vector<32x128xf32>
    %cst_37 = arith.constant 0.000000e+00 : f32
    %43 = vector.broadcast %cst_37 : f32 to vector<32x128xf32>
    %44 = arith.maximumf %42, %43 : vector<32x128xf32>
    %c1_38 = arith.constant 1 : index
    %c0_39 = arith.constant 0 : index
    %c0_40 = arith.constant 0 : index
    %45 = vector.load %arg7[%c1_38, %c0_39, %c0_40] : memref<2x32x128xf32, #tpu.memory_space<vmem>>, vector<1x32x128xf32>
    %46 = vector.shape_cast %45 : vector<1x32x128xf32> to vector<32x128xf32>
    %47 = vector.shape_cast %44 : vector<32x128xf32> to vector<1x32x128xf32>
    tpu.vector_store %arg7[%c1_38, %c0_39, %c0_40], %47 {strides = array<i32>} : memref<2x32x128xf32, #tpu.memory_space<vmem>>, vector<1x32x128xf32>,
    return
  }
  func.func @transform_0(%arg0: i32) -> (i32, i32) {
    %c0_i32 = arith.constant 0 : i32
    %c0_i32_0 = arith.constant 0 : i32
    %c0_i32_1 = arith.constant 0 : i32
    return %c0_i32, %c0_i32_0 : i32, i32
  }
  func.func @transform_1(%arg0: i32) -> (i32, i32) {
    %c0_i32 = arith.constant 0 : i32
    %c0_i32_0 = arith.constant 0 : i32
    %c0_i32_1 = arith.constant 0 : i32
    return %c0_i32, %c0_i32_0 : i32, i32
  }
  func.func @transform_2(%arg0: i32) -> (i32, i32, i32) {
    %c0_i32 = arith.constant 0 : i32
    %c0_i32_0 = arith.constant 0 : i32
    %c0_i32_1 = arith.constant 0 : i32
    %c0_i32_2 = arith.constant 0 : i32
    return %c0_i32, %c0_i32_0, %c0_i32_1 : i32, i32, i32
  }
  func.func @transform_3(%arg0: i32) -> (i32, i32, i32) {
    %c0_i32 = arith.constant 0 : i32
    %c0_i32_0 = arith.constant 0 : i32
    %c0_i32_1 = arith.constant 0 : i32
    %c0_i32_2 = arith.constant 0 : i32
    return %c0_i32, %c0_i32_0, %c0_i32_1 : i32, i32, i32
  }
  func.func @transform_4(%arg0: i32) -> (i32, i32, i32) {
    %c0_i32 = arith.constant 0 : i32
    %c0_i32_0 = arith.constant 0 : i32
    %c0_i32_1 = arith.constant 0 : i32
    %c0_i32_2 = arith.constant 0 : i32
    return %c0_i32, %c0_i32_0, %c0_i32_1 : i32, i32, i32
  }
  func.func @transform_5(%arg0: i32) -> (i32, i32, i32) {
    %c0_i32 = arith.constant 0 : i32
    %c0_i32_0 = arith.constant 0 : i32
    %c0_i32_1 = arith.constant 0 : i32
    %c0_i32_2 = arith.constant 0 : i32
    return %c0_i32, %c0_i32_0, %c0_i32_1 : i32, i32, i32
  }
  func.func @transform_6(%arg0: i32) -> (i32, i32, i32) {
    %c0_i32 = arith.constant 0 : i32
    %c0_i32_0 = arith.constant 0 : i32
    %c0_i32_1 = arith.constant 0 : i32
    %c0_i32_2 = arith.constant 0 : i32
    return %c0_i32, %c0_i32_0, %c0_i32_1 : i32, i32, i32
  }
}

</mosaic_0001>

<llo_original>
// kernel: tpu_custom_call.1
$region0: #{tpu_custom_call.1}
  #allocation0 [shape = 'u32[]', space=smem, size = 0x4, offset = 0x4, fixed_abs, tag = 'smem constant byte address 0x4 - core index']
  #allocation1 [shape = 'u32[144,128]{1,0:T(1,128)}', space=vmem, size = 0x12000, scoped, tag = 'internal scratch']
  %s0 = inlined_call_operand.hbm [shape: f32[32,32], index: 0, kind: input, shape index: {}]
  %s1 = inlined_call_operand.hbm [shape: f32[32,128], index: 1, kind: input, shape index: {}]
  %s2 = inlined_call_operand.hbm [shape: f32[2,128,128], index: 2, kind: input, shape index: {}]
  %s3 = inlined_call_operand.vmem [shape: f32[2,1,128], index: 3, kind: input, shape index: {}]
  %s4 = inlined_call_operand.hbm [shape: f32[2,128,128], index: 4, kind: input, shape index: {}]
  %s5 = inlined_call_operand.vmem [shape: f32[2,1,128], index: 5, kind: input, shape index: {}]
  %s6 = inlined_call_operand.hbm [shape: f32[2,32,128], index: 6, kind: output, shape index: {}]
  %s7 = sld [smem:[#allocation0]]
  $region50: #{tpu_custom_call.1} parent=0
    _
  %s9 = ssub.s32 1, %s7
  %s10 = scalar_select 0, %s9, %s7
  $region1: #{tpu_custom_call.1} parent=0
    #allocation2 [shape = 'u8[16384]{0}', space=vmem, size = 0x4000, scoped, tag = 'input window, operand 0, single buffered']
    #allocation3 [shape = 's32[1]{0}', space=sflag, size = 0x4, scoped, tag = 'scoped memory for tpu_custom_call.1']
    #allocation4 [shape = 's32[1]{0}', space=sflag, size = 0x4, scoped, tag = 'scoped memory for tpu_custom_call.1']
    #allocation5 [shape = 'u8[16384]{0}', space=vmem, size = 0x4000, scoped, tag = 'input window, operand 1, single buffered']
    #allocation6 [shape = 's32[1]{0}', space=sflag, size = 0x4, scoped, tag = 'scoped memory for tpu_custom_call.1']
    #allocation7 [shape = 'u8[131072]{0}', space=vmem, size = 0x20000, scoped, tag = 'input window, operand 2, single buffered']
    #allocation8 [shape = 'u8[131072]{0}', space=vmem, size = 0x20000, scoped, tag = 'input window, operand 4, single buffered']
    #allocation9 [shape = 's32[1]{0}', space=sflag, size = 0x4, scoped, tag = 'scoped memory for tpu_custom_call.1']
    #allocation10 [shape = 'u8[32768]{0}', space=vmem, size = 0x8000, scoped, tag = 'output window, operand 0, single buffered']
    %11 = vsyncpa [#allocation3], 0
    %12 = vsyncpa [#allocation6], 0
    %13 = vsyncpa [#allocation9], 0
    %14 = vsyncpa [#allocation4], 0
    // Predicated region
    $region2: #{tpu_custom_call.1} parent=1 // pred_check
      _
    $region3: #{tpu_custom_call.1} parent=1 // pred_check_branch
      %16 = sbr.rel (0) target = $region5
    $region4: #{tpu_custom_call.1} parent=1 // pred_region
      %s18 = ssub.s32 512, 512
      %19 = vsyncadd [#allocation3], %s18
      %s20 = sshll.u32 [#allocation2], 4
      %s21 = int_to_ptr.vmem [resolvable:$true] %s20
      %26 = dma.hbm_to_vmem [thread:$0]  %s0, 512, %s21, [#allocation3], 128, 128, 8
    $region5: #{tpu_custom_call.1} parent=1 // pred_fallthru
      _
    // Predicated region
    $region6: #{tpu_custom_call.1} parent=1 // pred_check
      _
    $region7: #{tpu_custom_call.1} parent=1 // pred_check_branch
      %28 = sbr.rel (0) target = $region9
    $region8: #{tpu_custom_call.1} parent=1 // pred_region
      %s30 = ssub.s32 512, 512
      %31 = vsyncadd [#allocation6], %s30
      %s32 = sshll.u32 [#allocation5], 4
      %s33 = int_to_ptr.vmem [resolvable:$true] %s32
      %38 = dma.hbm_to_vmem [thread:$0]  %s1, 512, %s33, [#allocation6], 128, 128, 8
    $region9: #{tpu_custom_call.1} parent=1 // pred_fallthru
      _
    // Predicated region
    $region10: #{tpu_custom_call.1} parent=1 // pred_check
      _
    $region11: #{tpu_custom_call.1} parent=1 // pred_check_branch
      %40 = sbr.rel (0) target = $region13
    $region12: #{tpu_custom_call.1} parent=1 // pred_region
      %s42 = ssub.s32 4096, 4096
      %43 = vsyncadd [#allocation6], %s42
      %s44 = sshll.u32 [#allocation7], 4
      %s45 = int_to_ptr.vmem [resolvable:$true] %s44
      %50 = dma.hbm_to_vmem [thread:$0]  %s2, 4096, %s45, [#allocation6], 128, 128, 8
    $region13: #{tpu_custom_call.1} parent=1 // pred_fallthru
      _
    // Predicated region
    $region14: #{tpu_custom_call.1} parent=1 // pred_check
      _
    $region15: #{tpu_custom_call.1} parent=1 // pred_check_branch
      %52 = sbr.rel (0) target = $region17
    $region16: #{tpu_custom_call.1} parent=1 // pred_region
      _
    $region17: #{tpu_custom_call.1} parent=1 // pred_fallthru
      _
    // Predicated region
    $region18: #{tpu_custom_call.1} parent=1 // pred_check
      _
    $region19: #{tpu_custom_call.1} parent=1 // pred_check_branch
      %54 = sbr.rel (0) target = $region21
    $region20: #{tpu_custom_call.1} parent=1 // pred_region
      %s56 = ssub.s32 4096, 4096
      %57 = vsyncadd [#allocation9], %s56
      %s58 = sshll.u32 [#allocation8], 4
      %s59 = int_to_ptr.vmem [resolvable:$true] %s58
      %64 = dma.hbm_to_vmem [thread:$0]  %s4, 4096, %s59, [#allocation9], 128, 128, 8
    $region21: #{tpu_custom_call.1} parent=1 // pred_fallthru
      _
    // Predicated region
    $region22: #{tpu_custom_call.1} parent=1 // pred_check
      _
    $region23: #{tpu_custom_call.1} parent=1 // pred_check_branch
      %66 = sbr.rel (0) target = $region25
    $region24: #{tpu_custom_call.1} parent=1 // pred_region
      _
    $region25: #{tpu_custom_call.1} parent=1 // pred_fallthru
      _
    // Predicated region
    $region26: #{tpu_custom_call.1} parent=1 // pred_check
      _
    $region27: #{tpu_custom_call.1} parent=1 // pred_check_branch
      %68 = sbr.rel (0) target = $region29
    $region28: #{tpu_custom_call.1} parent=1 // pred_region
      %69 = dma.done [#allocation3], 512
    $region29: #{tpu_custom_call.1} parent=1 // pred_fallthru
      _
    // Predicated region
    $region30: #{tpu_custom_call.1} parent=1 // pred_check
      _
    $region31: #{tpu_custom_call.1} parent=1 // pred_check_branch
      %71 = sbr.rel (0) target = $region33
    $region32: #{tpu_custom_call.1} parent=1 // pred_region
      %72 = dma.done [#allocation6], 512
    $region33: #{tpu_custom_call.1} parent=1 // pred_fallthru
      _
    // Predicated region
    $region34: #{tpu_custom_call.1} parent=1 // pred_check
      _
    $region35: #{tpu_custom_call.1} parent=1 // pred_check_branch
      %74 = sbr.rel (0) target = $region37
    $region36: #{tpu_custom_call.1} parent=1 // pred_region
      %75 = dma.done [#allocation6], 4096
    $region37: #{tpu_custom_call.1} parent=1 // pred_fallthru
      _
    // Predicated region
    $region38: #{tpu_custom_call.1} parent=1 // pred_check
      _
    $region39: #{tpu_custom_call.1} parent=1 // pred_check_branch
      %77 = sbr.rel (0) target = $region41
    $region40: #{tpu_custom_call.1} parent=1 // pred_region
      %78 = dma.done [#allocation9], 4096
    $region41: #{tpu_custom_call.1} parent=1 // pred_fallthru
      _
    %v79 = vld [vmem:[#allocation2] sm:$0xff]
    %v80 = vld [vmem:[#allocation2 + $0x8] sm:$0xff]
    %v81 = vld [vmem:[#allocation2 + $0x10] sm:$0xff]
    %v82 = vld [vmem:[#allocation2 + $0x18] sm:$0xff]
    %v83 = vld [vmem:[#allocation5] sm:$0xff]
    %v84 = vld [vmem:[#allocation5 + $0x8] sm:$0xff]
    %v85 = vld [vmem:[#allocation5 + $0x10] sm:$0xff]
    %v86 = vld [vmem:[#allocation5 + $0x18] sm:$0xff]
    %vm87 = vcmask 261120
    %v89 = vsel %vm87, %v79, 0
    %v92 = vsel %vm87, %v80, 0
    %v95 = vsel %vm87, %v81, 0
    %v98 = vsel %vm87, %v82, 0
    %100 = vmatprep.subr.mxu0 0.0
    %101 = vmatpush1.msra.mxu0 0.0
    %102 = vmatprep.subr.mxu0 0.0
    %103 = vmatpush1.msra.mxu0 0.0
    %104 = vmatprep.subr.mxu0 0.0
    %105 = vmatpush1.msra.mxu0 0.0
    %106 = vmatprep.subr.mxu0 0.0
    %107 = vmatpush1.msra.mxu0 0.0
    %108 = vmatprep.subr.mxu0 0.0
    %109 = vmatpush1.msra.mxu0 0.0
    %110 = vmatprep.subr.mxu0 0.0
    %111 = vmatpush1.msra.mxu0 0.0
    %112 = vmatprep.subr.mxu0 0.0
    %113 = vmatpush1.msra.mxu0 0.0
    %114 = vmatprep.subr.mxu0 0.0
    %115 = vmatpush1.msra.mxu0 0.0
    %116 = vmatprep.subr.mxu0 0.0
    %117 = vmatpush1.msra.mxu0 0.0
    %118 = vmatprep.subr.mxu0 0.0
    %119 = vmatpush1.msra.mxu0 0.0
    %120 = vmatprep.subr.mxu0 0.0
    %121 = vmatpush1.msra.mxu0 0.0
    %122 = vmatprep.subr.mxu0 0.0
    %123 = vmatpush1.msra.mxu0 0.0
    %124 = vmatprep.subr.mxu0 0.0
    %125 = vmatpush1.msra.mxu0 %v86
    %126 = vmatprep.subr.mxu0 0.0
    %127 = vmatpush1.msra.mxu0 %v85
    %128 = vmatprep.subr.mxu0 0.0
    %129 = vmatpush1.msra.mxu0 %v84
    %130 = vmatprep.subr.mxu0 0.0
    %131 = vmatpush1.msra.mxu0 %v83
    %132 = vmatprep.subr.mxu0 0.0
    %133 = vmatpush2.msra.mxu0 0.0
    %134 = vmatprep.subr.mxu0 0.0
    %135 = vmatpush2.msra.mxu0 0.0
    %136 = vmatprep.subr.mxu0 0.0
    %137 = vmatpush2.msra.mxu0 0.0
    %138 = vmatprep.subr.mxu0 0.0
    %139 = vmatpush2.msra.mxu0 0.0
    %140 = vmatprep.subr.mxu0 0.0
    %141 = vmatpush2.msra.mxu0 0.0
    %142 = vmatprep.subr.mxu0 0.0
    %143 = vmatpush2.msra.mxu0 0.0
    %144 = vmatprep.subr.mxu0 0.0
    %145 = vmatpush2.msra.mxu0 0.0
    %146 = vmatprep.subr.mxu0 0.0
    %147 = vmatpush2.msra.mxu0 0.0
    %148 = vmatprep.subr.mxu0 0.0
    %149 = vmatpush2.msra.mxu0 0.0
    %150 = vmatprep.subr.mxu0 0.0
    %151 = vmatpush2.msra.mxu0 0.0
    %152 = vmatprep.subr.mxu0 0.0
    %153 = vmatpush2.msra.mxu0 0.0
    %154 = vmatprep.subr.mxu0 0.0
    %155 = vmatpush2.msra.mxu0 0.0
    %156 = vmatprep.subr.mxu0 0.0
    %157 = vmatpush2.msra.mxu0 0.0
    %158 = vmatprep.subr.mxu0 0.0
    %159 = vmatpush2.msra.mxu0 0.0
    %160 = vmatprep.subr.mxu0 0.0
    %161 = vmatpush2.msra.mxu0 0.0
    %162 = vmatprep.subr.mxu0 0.0
    %163 = vmatpush2.msra.mxu0 0.0
    %164 = vmatprep.mubr.f32.mxu0 0.0
    %165 = vmatmul.mubr.f32.gmra.mxu0 %v89
    %v166 = vpop.f32.mrf.mxu0
    %v167 = vadd.f32 0.0, %v166
    %v168 = vpop.f32.mrf.mxu0
    %169 = vmatprep.mubr.f32.mxu0 0.0
    %170 = vmatmul.mubr.f32.gmra.mxu0 %v92
    %v171 = vpop.f32.mrf.mxu0
    %v172 = vadd.f32 0.0, %v171
    %v173 = vpop.f32.mrf.mxu0
    %174 = vmatprep.mubr.f32.mxu0 0.0
    %175 = vmatmul.mubr.f32.gmra.mxu0 %v95
    %v176 = vpop.f32.mrf.mxu0
    %v177 = vadd.f32 0.0, %v176
    %v178 = vpop.f32.mrf.mxu0
    %179 = vmatprep.mubr.f32.mxu0 0.0
    %180 = vmatmul.mubr.f32.gmra.mxu0 %v98
    %v181 = vpop.f32.mrf.mxu0
    %v182 = vadd.f32 0.0, %v181
    %v183 = vpop.f32.mrf.mxu0
    %184 = vdwg.mxu0
    %v185 = vadd.f32 %v83, %v167
    %v186 = vadd.f32 %v84, %v172
    %v187 = vadd.f32 %v85, %v177
    %v188 = vadd.f32 %v86, %v182
    %v189 = vld [vmem:[#allocation7] sm:$0xff]
    %v190 = vld [vmem:[#allocation7 + $0x8] sm:$0xff]
    %v191 = vld [vmem:[#allocation7 + $0x10] sm:$0xff]
    %v192 = vld [vmem:[#allocation7 + $0x18] sm:$0xff]
    %v193 = vld [vmem:[#allocation7 + $0x20] sm:$0xff]
    %v194 = vld [vmem:[#allocation7 + $0x28] sm:$0xff]
    %v195 = vld [vmem:[#allocation7 + $0x30] sm:$0xff]
    %v196 = vld [vmem:[#allocation7 + $0x38] sm:$0xff]
    %v197 = vld [vmem:[#allocation7 + $0x40] sm:$0xff]
    %v198 = vld [vmem:[#allocation7 + $0x48] sm:$0xff]
    %v199 = vld [vmem:[#allocation7 + $0x50] sm:$0xff]
    %v200 = vld [vmem:[#allocation7 + $0x58] sm:$0xff]
    %v201 = vld [vmem:[#allocation7 + $0x60] sm:$0xff]
    %v202 = vld [vmem:[#allocation7 + $0x68] sm:$0xff]
    %v203 = vld [vmem:[#allocation7 + $0x70] sm:$0xff]
    %v204 = vld [vmem:[#allocation7 + $0x78] sm:$0xff]
    %v205 = vld [vmem:[%s3] sm:$0x1]
    %v207 = vlaneseq
    %v208 = vshrl.u32 %v207, 7
    %v209 = vsub.s32 0, %v208
    %v210 = vrot.slane %v205, %v209
    %212 = vmatprep.subr.mxu0 0.0
    %213 = vmatpush1.msra.mxu0 %v204
    %214 = vmatprep.subr.mxu0 0.0
    %215 = vmatpush1.msra.mxu0 %v203
    %216 = vmatprep.subr.mxu0 0.0
    %217 = vmatpush1.msra.mxu0 %v202
    %218 = vmatprep.subr.mxu0 0.0
    %219 = vmatpush1.msra.mxu0 %v201
    %220 = vmatprep.subr.mxu0 0.0
    %221 = vmatpush1.msra.mxu0 %v200
    %222 = vmatprep.subr.mxu0 0.0
    %223 = vmatpush1.msra.mxu0 %v199
    %224 = vmatprep.subr.mxu0 0.0
    %225 = vmatpush1.msra.mxu0 %v198
    %226 = vmatprep.subr.mxu0 0.0
    %227 = vmatpush1.msra.mxu0 %v197
    %228 = vmatprep.subr.mxu0 0.0
    %229 = vmatpush1.msra.mxu0 %v196
    %230 = vmatprep.subr.mxu0 0.0
    %231 = vmatpush1.msra.mxu0 %v195
    %232 = vmatprep.subr.mxu0 0.0
    %233 = vmatpush1.msra.mxu0 %v194
    %234 = vmatprep.subr.mxu0 0.0
    %235 = vmatpush1.msra.mxu0 %v193
    %236 = vmatprep.subr.mxu0 0.0
    %237 = vmatpush1.msra.mxu0 %v192
    %238 = vmatprep.subr.mxu0 0.0
    %239 = vmatpush1.msra.mxu0 %v191
    %240 = vmatprep.subr.mxu0 0.0
    %241 = vmatpush1.msra.mxu0 %v190
    %242 = vmatprep.subr.mxu0 0.0
    %243 = vmatpush1.msra.mxu0 %v189
    %244 = vmatprep.subr.mxu0 0.0
    %245 = vmatpush2.msra.mxu0 0.0
    %246 = vmatprep.subr.mxu0 0.0
    %247 = vmatpush2.msra.mxu0 0.0
    %248 = vmatprep.subr.mxu0 0.0
    %249 = vmatpush2.msra.mxu0 0.0
    %250 = vmatprep.subr.mxu0 0.0
    %251 = vmatpush2.msra.mxu0 0.0
    %252 = vmatprep.subr.mxu0 0.0
    %253 = vmatpush2.msra.mxu0 0.0
    %254 = vmatprep.subr.mxu0 0.0
    %255 = vmatpush2.msra.mxu0 0.0
    %256 = vmatprep.subr.mxu0 0.0
    %257 = vmatpush2.msra.mxu0 0.0
    %258 = vmatprep.subr.mxu0 0.0
    %259 = vmatpush2.msra.mxu0 0.0
    %260 = vmatprep.subr.mxu0 0.0
    %261 = vmatpush2.msra.mxu0 0.0
    %262 = vmatprep.subr.mxu0 0.0
    %263 = vmatpush2.msra.mxu0 0.0
    %264 = vmatprep.subr.mxu0 0.0
    %265 = vmatpush2.msra.mxu0 0.0
    %266 = vmatprep.subr.mxu0 0.0
    %267 = vmatpush2.msra.mxu0 0.0
    %268 = vmatprep.subr.mxu0 0.0
    %269 = vmatpush2.msra.mxu0 0.0
    %270 = vmatprep.subr.mxu0 0.0
    %271 = vmatpush2.msra.mxu0 0.0
    %272 = vmatprep.subr.mxu0 0.0
    %273 = vmatpush2.msra.mxu0 0.0
    %274 = vmatprep.subr.mxu0 0.0
    %275 = vmatpush2.msra.mxu0 0.0
    %276 = vmatprep.mubr.f32.mxu0 0.0
    %277 = vmatmul.mubr.f32.gmra.mxu0 %v185
    %v278 = vpop.f32.mrf.mxu0
    %v279 = vadd.f32 %v210, %v278
    %v280 = vpop.f32.mrf.mxu0
    %281 = vmatprep.mubr.f32.mxu0 0.0
    %282 = vmatmul.mubr.f32.gmra.mxu0 %v186
    %v283 = vpop.f32.mrf.mxu0
    %v284 = vadd.f32 %v210, %v283
    %v285 = vpop.f32.mrf.mxu0
    %286 = vmatprep.mubr.f32.mxu0 0.0
    %287 = vmatmul.mubr.f32.gmra.mxu0 %v187
    %v288 = vpop.f32.mrf.mxu0
    %v289 = vadd.f32 %v210, %v288
    %v290 = vpop.f32.mrf.mxu0
    %291 = vmatprep.mubr.f32.mxu0 0.0
    %292 = vmatmul.mubr.f32.gmra.mxu0 %v188
    %v293 = vpop.f32.mrf.mxu0
    %v294 = vadd.f32 %v210, %v293
    %v295 = vpop.f32.mrf.mxu0
    %296 = vdwg.mxu0
    %v297 = vmax.f32 %v279, 0.0
    %v298 = vmax.f32 %v284, 0.0
    %v299 = vmax.f32 %v289, 0.0
    %v300 = vmax.f32 %v294, 0.0
    %v301 = vld [vmem:[#allocation8] sm:$0xff]
    %v302 = vld [vmem:[#allocation8 + $0x8] sm:$0xff]
    %v303 = vld [vmem:[#allocation8 + $0x10] sm:$0xff]
    %v304 = vld [vmem:[#allocation8 + $0x18] sm:$0xff]
    %v305 = vld [vmem:[#allocation8 + $0x20] sm:$0xff]
    %v306 = vld [vmem:[#allocation8 + $0x28] sm:$0xff]
    %v307 = vld [vmem:[#allocation8 + $0x30] sm:$0xff]
    %v308 = vld [vmem:[#allocation8 + $0x38] sm:$0xff]
    %v309 = vld [vmem:[#allocation8 + $0x40] sm:$0xff]
    %v310 = vld [vmem:[#allocation8 + $0x48] sm:$0xff]
    %v311 = vld [vmem:[#allocation8 + $0x50] sm:$0xff]
    %v312 = vld [vmem:[#allocation8 + $0x58] sm:$0xff]
    %v313 = vld [vmem:[#allocation8 + $0x60] sm:$0xff]
    %v314 = vld [vmem:[#allocation8 + $0x68] sm:$0xff]
    %v315 = vld [vmem:[#allocation8 + $0x70] sm:$0xff]
    %v316 = vld [vmem:[#allocation8 + $0x78] sm:$0xff]
    %v317 = vld [vmem:[%s5] sm:$0x1]
    %v319 = vlaneseq
    %v320 = vshrl.u32 %v319, 7
    %v321 = vsub.s32 0, %v320
    %v322 = vrot.slane %v317, %v321
    %324 = vmatprep.subr.mxu0 0.0
    %325 = vmatpush1.msra.mxu0 %v316
    %326 = vmatprep.subr.mxu0 0.0
    %327 = vmatpush1.msra.mxu0 %v315
    %328 = vmatprep.subr.mxu0 0.0
    %329 = vmatpush1.msra.mxu0 %v314
    %330 = vmatprep.subr.mxu0 0.0
    %331 = vmatpush1.msra.mxu0 %v313
    %332 = vmatprep.subr.mxu0 0.0
    %333 = vmatpush1.msra.mxu0 %v312
    %334 = vmatprep.subr.mxu0 0.0
    %335 = vmatpush1.msra.mxu0 %v311
    %336 = vmatprep.subr.mxu0 0.0
    %337 = vmatpush1.msra.mxu0 %v310
    %338 = vmatprep.subr.mxu0 0.0
    %339 = vmatpush1.msra.mxu0 %v309
    %340 = vmatprep.subr.mxu0 0.0
    %341 = vmatpush1.msra.mxu0 %v308
    %342 = vmatprep.subr.mxu0 0.0
    %343 = vmatpush1.msra.mxu0 %v307
    %344 = vmatprep.subr.mxu0 0.0
    %345 = vmatpush1.msra.mxu0 %v306
    %346 = vmatprep.subr.mxu0 0.0
    %347 = vmatpush1.msra.mxu0 %v305
    %348 = vmatprep.subr.mxu0 0.0
    %349 = vmatpush1.msra.mxu0 %v304
    %350 = vmatprep.subr.mxu0 0.0
    %351 = vmatpush1.msra.mxu0 %v303
    %352 = vmatprep.subr.mxu0 0.0
    %353 = vmatpush1.msra.mxu0 %v302
    %354 = vmatprep.subr.mxu0 0.0
    %355 = vmatpush1.msra.mxu0 %v301
    %356 = vmatprep.subr.mxu0 0.0
    %357 = vmatpush2.msra.mxu0 0.0
    %358 = vmatprep.subr.mxu0 0.0
    %359 = vmatpush2.msra.mxu0 0.0
    %360 = vmatprep.subr.mxu0 0.0
    %361 = vmatpush2.msra.mxu0 0.0
    %362 = vmatprep.subr.mxu0 0.0
    %363 = vmatpush2.msra.mxu0 0.0
    %364 = vmatprep.subr.mxu0 0.0
    %365 = vmatpush2.msra.mxu0 0.0
    %366 = vmatprep.subr.mxu0 0.0
    %367 = vmatpush2.msra.mxu0 0.0
    %368 = vmatprep.subr.mxu0 0.0
    %369 = vmatpush2.msra.mxu0 0.0
    %370 = vmatprep.subr.mxu0 0.0
    %371 = vmatpush2.msra.mxu0 0.0
    %372 = vmatprep.subr.mxu0 0.0
    %373 = vmatpush2.msra.mxu0 0.0
    %374 = vmatprep.subr.mxu0 0.0
    %375 = vmatpush2.msra.mxu0 0.0
    %376 = vmatprep.subr.mxu0 0.0
    %377 = vmatpush2.msra.mxu0 0.0
    %378 = vmatprep.subr.mxu0 0.0
    %379 = vmatpush2.msra.mxu0 0.0
    %380 = vmatprep.subr.mxu0 0.0
    %381 = vmatpush2.msra.mxu0 0.0
    %382 = vmatprep.subr.mxu0 0.0
    %383 = vmatpush2.msra.mxu0 0.0
    %384 = vmatprep.subr.mxu0 0.0
    %385 = vmatpush2.msra.mxu0 0.0
    %386 = vmatprep.subr.mxu0 0.0
    %387 = vmatpush2.msra.mxu0 0.0
    %388 = vmatprep.mubr.f32.mxu0 0.0
    %389 = vmatmul.mubr.f32.gmra.mxu0 %v297
    %v390 = vpop.f32.mrf.mxu0
    %v391 = vadd.f32 %v322, %v390
    %v392 = vpop.f32.mrf.mxu0
    %393 = vmatprep.mubr.f32.mxu0 0.0
    %394 = vmatmul.mubr.f32.gmra.mxu0 %v298
    %v395 = vpop.f32.mrf.mxu0
    %v396 = vadd.f32 %v322, %v395
    %v397 = vpop.f32.mrf.mxu0
    %398 = vmatprep.mubr.f32.mxu0 0.0
    %399 = vmatmul.mubr.f32.gmra.mxu0 %v299
    %v400 = vpop.f32.mrf.mxu0
    %v401 = vadd.f32 %v322, %v400
    %v402 = vpop.f32.mrf.mxu0
    %403 = vmatprep.mubr.f32.mxu0 0.0
    %404 = vmatmul.mubr.f32.gmra.mxu0 %v300
    %v405 = vpop.f32.mrf.mxu0
    %v406 = vadd.f32 %v322, %v405
    %v407 = vpop.f32.mrf.mxu0
    %408 = vdwg.mxu0
    %v409 = vmax.f32 %v391, 0.0
    %v410 = vmax.f32 %v396, 0.0
    %v411 = vmax.f32 %v401, 0.0
    %v412 = vmax.f32 %v406, 0.0
    %413 = vst [vmem:[#allocation10] sm:$0xff] %v409
    %414 = vst [vmem:[#allocation10 + $0x8] sm:$0xff] %v410
    %415 = vst [vmem:[#allocation10 + $0x10] sm:$0xff] %v411
    %416 = vst [vmem:[#allocation10 + $0x18] sm:$0xff] %v412
    %417 = vmatprep.subr.mxu0 0.0
    %418 = vmatpush1.msra.mxu0 0.0
    %419 = vmatprep.subr.mxu0 0.0
    %420 = vmatpush1.msra.mxu0 0.0
    %421 = vmatprep.subr.mxu0 0.0
    %422 = vmatpush1.msra.mxu0 0.0
    %423 = vmatprep.subr.mxu0 0.0
    %424 = vmatpush1.msra.mxu0 0.0
    %425 = vmatprep.subr.mxu0 0.0
    %426 = vmatpush1.msra.mxu0 0.0
    %427 = vmatprep.subr.mxu0 0.0
    %428 = vmatpush1.msra.mxu0 0.0
    %429 = vmatprep.subr.mxu0 0.0
    %430 = vmatpush1.msra.mxu0 0.0
    %431 = vmatprep.subr.mxu0 0.0
    %432 = vmatpush1.msra.mxu0 0.0
    %433 = vmatprep.subr.mxu0 0.0
    %434 = vmatpush1.msra.mxu0 0.0
    %435 = vmatprep.subr.mxu0 0.0
    %436 = vmatpush1.msra.mxu0 0.0
    %437 = vmatprep.subr.mxu0 0.0
    %438 = vmatpush1.msra.mxu0 0.0
    %439 = vmatprep.subr.mxu0 0.0
    %440 = vmatpush1.msra.mxu0 0.0
    %441 = vmatprep.subr.mxu0 0.0
    %442 = vmatpush1.msra.mxu0 %v412
    %443 = vmatprep.subr.mxu0 0.0
    %444 = vmatpush1.msra.mxu0 %v411
    %445 = vmatprep.subr.mxu0 0.0
    %446 = vmatpush1.msra.mxu0 %v410
    %447 = vmatprep.subr.mxu0 0.0
    %448 = vmatpush1.msra.mxu0 %v409
    %449 = vmatprep.subr.mxu0 0.0
    %450 = vmatpush2.msra.mxu0 0.0
    %451 = vmatprep.subr.mxu0 0.0
    %452 = vmatpush2.msra.mxu0 0.0
    %453 = vmatprep.subr.mxu0 0.0
    %454 = vmatpush2.msra.mxu0 0.0
    %455 = vmatprep.subr.mxu0 0.0
    %456 = vmatpush2.msra.mxu0 0.0
    %457 = vmatprep.subr.mxu0 0.0
    %458 = vmatpush2.msra.mxu0 0.0
    %459 = vmatprep.subr.mxu0 0.0
    %460 = vmatpush2.msra.mxu0 0.0
    %461 = vmatprep.subr.mxu0 0.0
    %462 = vmatpush2.msra.mxu0 0.0
    %463 = vmatprep.subr.mxu0 0.0
    %464 = vmatpush2.msra.mxu0 0.0
    %465 = vmatprep.subr.mxu0 0.0
    %466 = vmatpush2.msra.mxu0 0.0
    %467 = vmatprep.subr.mxu0 0.0
    %468 = vmatpush2.msra.mxu0 0.0
    %469 = vmatprep.subr.mxu0 0.0
    %470 = vmatpush2.msra.mxu0 0.0
    %471 = vmatprep.subr.mxu0 0.0
    %472 = vmatpush2.msra.mxu0 0.0
    %473 = vmatprep.subr.mxu0 0.0
    %474 = vmatpush2.msra.mxu0 0.0
    %475 = vmatprep.subr.mxu0 0.0
    %476 = vmatpush2.msra.mxu0 0.0
    %477 = vmatprep.subr.mxu0 0.0
    %478 = vmatpush2.msra.mxu0 0.0
    %479 = vmatprep.subr.mxu0 0.0
    %480 = vmatpush2.msra.mxu0 0.0
    %481 = vmatprep.mubr.f32.mxu0 0.0
    %482 = vmatmul.mubr.f32.gmra.mxu0 %v89
    %v483 = vpop.f32.mrf.mxu0
    %v484 = vadd.f32 0.0, %v483
    %v485 = vpop.f32.mrf.mxu0
    %486 = vmatprep.mubr.f32.mxu0 0.0
    %487 = vmatmul.mubr.f32.gmra.mxu0 %v92
    %v488 = vpop.f32.mrf.mxu0
    %v489 = vadd.f32 0.0, %v488
    %v490 = vpop.f32.mrf.mxu0
    %491 = vmatprep.mubr.f32.mxu0 0.0
    %492 = vmatmul.mubr.f32.gmra.mxu0 %v95
    %v493 = vpop.f32.mrf.mxu0
    %v494 = vadd.f32 0.0, %v493
    %v495 = vpop.f32.mrf.mxu0
    %496 = vmatprep.mubr.f32.mxu0 0.0
    %497 = vmatmul.mubr.f32.gmra.mxu0 %v98
    %v498 = vpop.f32.mrf.mxu0
    %v499 = vadd.f32 0.0, %v498
    %v500 = vpop.f32.mrf.mxu0
    %501 = vdwg.mxu0
    %v502 = vadd.f32 %v409, %v484
    %v503 = vadd.f32 %v410, %v489
    %v504 = vadd.f32 %v411, %v494
    %v505 = vadd.f32 %v412, %v499
    %s506 = scalar_lea.vmem [#allocation7], 128
    %v507 = vld [vmem:[%s506] sm:$0xff]
    %v508 = vld [vmem:[%s506 + $0x8] sm:$0xff]
    %v509 = vld [vmem:[%s506 + $0x10] sm:$0xff]
    %v510 = vld [vmem:[%s506 + $0x18] sm:$0xff]
    %v511 = vld [vmem:[%s506 + $0x20] sm:$0xff]
    %v512 = vld [vmem:[%s506 + $0x28] sm:$0xff]
    %v513 = vld [vmem:[%s506 + $0x30] sm:$0xff]
    %v514 = vld [vmem:[%s506 + $0x38] sm:$0xff]
    %v515 = vld [vmem:[%s506 + $0x40] sm:$0xff]
    %v516 = vld [vmem:[%s506 + $0x48] sm:$0xff]
    %v517 = vld [vmem:[%s506 + $0x50] sm:$0xff]
    %v518 = vld [vmem:[%s506 + $0x58] sm:$0xff]
    %v519 = vld [vmem:[%s506 + $0x60] sm:$0xff]
    %v520 = vld [vmem:[%s506 + $0x68] sm:$0xff]
    %v521 = vld [vmem:[%s506 + $0x70] sm:$0xff]
    %v522 = vld [vmem:[%s506 + $0x78] sm:$0xff]
    %s523 = scalar_lea.vmem %s3, 1
    %v524 = vld [vmem:[%s523] sm:$0x1]
    %v526 = vlaneseq
    %v527 = vshrl.u32 %v526, 7
    %v528 = vsub.s32 0, %v527
    %v529 = vrot.slane %v524, %v528
    %531 = vmatprep.subr.mxu0 0.0
    %532 = vmatpush1.msra.mxu0 %v522
    %533 = vmatprep.subr.mxu0 0.0
    %534 = vmatpush1.msra.mxu0 %v521
    %535 = vmatprep.subr.mxu0 0.0
    %536 = vmatpush1.msra.mxu0 %v520
    %537 = vmatprep.subr.mxu0 0.0
    %538 = vmatpush1.msra.mxu0 %v519
    %539 = vmatprep.subr.mxu0 0.0
    %540 = vmatpush1.msra.mxu0 %v518
    %541 = vmatprep.subr.mxu0 0.0
    %542 = vmatpush1.msra.mxu0 %v517
    %543 = vmatprep.subr.mxu0 0.0
    %544 = vmatpush1.msra.mxu0 %v516
    %545 = vmatprep.subr.mxu0 0.0
    %546 = vmatpush1.msra.mxu0 %v515
    %547 = vmatprep.subr.mxu0 0.0
    %548 = vmatpush1.msra.mxu0 %v514
    %549 = vmatprep.subr.mxu0 0.0
    %550 = vmatpush1.msra.mxu0 %v513
    %551 = vmatprep.subr.mxu0 0.0
    %552 = vmatpush1.msra.mxu0 %v512
    %553 = vmatprep.subr.mxu0 0.0
    %554 = vmatpush1.msra.mxu0 %v511
    %555 = vmatprep.subr.mxu0 0.0
    %556 = vmatpush1.msra.mxu0 %v510
    %557 = vmatprep.subr.mxu0 0.0
    %558 = vmatpush1.msra.mxu0 %v509
    %559 = vmatprep.subr.mxu0 0.0
    %560 = vmatpush1.msra.mxu0 %v508
    %561 = vmatprep.subr.mxu0 0.0
    %562 = vmatpush1.msra.mxu0 %v507
    %563 = vmatprep.subr.mxu0 0.0
    %564 = vmatpush2.msra.mxu0 0.0
    %565 = vmatprep.subr.mxu0 0.0
    %566 = vmatpush2.msra.mxu0 0.0
    %567 = vmatprep.subr.mxu0 0.0
    %568 = vmatpush2.msra.mxu0 0.0
    %569 = vmatprep.subr.mxu0 0.0
    %570 = vmatpush2.msra.mxu0 0.0
    %571 = vmatprep.subr.mxu0 0.0
    %572 = vmatpush2.msra.mxu0 0.0
    %573 = vmatprep.subr.mxu0 0.0
    %574 = vmatpush2.msra.mxu0 0.0
    %575 = vmatprep.subr.mxu0 0.0
    %576 = vmatpush2.msra.mxu0 0.0
    %577 = vmatprep.subr.mxu0 0.0
    %578 = vmatpush2.msra.mxu0 0.0
    %579 = vmatprep.subr.mxu0 0.0
    %580 = vmatpush2.msra.mxu0 0.0
    %581 = vmatprep.subr.mxu0 0.0
    %582 = vmatpush2.msra.mxu0 0.0
    %583 = vmatprep.subr.mxu0 0.0
    %584 = vmatpush2.msra.mxu0 0.0
    %585 = vmatprep.subr.mxu0 0.0
    %586 = vmatpush2.msra.mxu0 0.0
    %587 = vmatprep.subr.mxu0 0.0
    %588 = vmatpush2.msra.mxu0 0.0
    %589 = vmatprep.subr.mxu0 0.0
    %590 = vmatpush2.msra.mxu0 0.0
    %591 = vmatprep.subr.mxu0 0.0
    %592 = vmatpush2.msra.mxu0 0.0
    %593 = vmatprep.subr.mxu0 0.0
    %594 = vmatpush2.msra.mxu0 0.0
    %595 = vmatprep.mubr.f32.mxu0 0.0
    %596 = vmatmul.mubr.f32.gmra.mxu0 %v502
    %v597 = vpop.f32.mrf.mxu0
    %v598 = vadd.f32 %v529, %v597
    %v599 = vpop.f32.mrf.mxu0
    %600 = vmatprep.mubr.f32.mxu0 0.0
    %601 = vmatmul.mubr.f32.gmra.mxu0 %v503
    %v602 = vpop.f32.mrf.mxu0
    %v603 = vadd.f32 %v529, %v602
    %v604 = vpop.f32.mrf.mxu0
    %605 = vmatprep.mubr.f32.mxu0 0.0
    %606 = vmatmul.mubr.f32.gmra.mxu0 %v504
    %v607 = vpop.f32.mrf.mxu0
    %v608 = vadd.f32 %v529, %v607
    %v609 = vpop.f32.mrf.mxu0
    %610 = vmatprep.mubr.f32.mxu0 0.0
    %611 = vmatmul.mubr.f32.gmra.mxu0 %v505
    %v612 = vpop.f32.mrf.mxu0
    %v613 = vadd.f32 %v529, %v612
    %v614 = vpop.f32.mrf.mxu0
    %615 = vdwg.mxu0
    %v616 = vmax.f32 %v598, 0.0
    %v617 = vmax.f32 %v603, 0.0
    %v618 = vmax.f32 %v608, 0.0
    %v619 = vmax.f32 %v613, 0.0
    %s620 = scalar_lea.vmem [#allocation8], 128
    %v621 = vld [vmem:[%s620] sm:$0xff]
    %v622 = vld [vmem:[%s620 + $0x8] sm:$0xff]
    %v623 = vld [vmem:[%s620 + $0x10] sm:$0xff]
    %v624 = vld [vmem:[%s620 + $0x18] sm:$0xff]
    %v625 = vld [vmem:[%s620 + $0x20] sm:$0xff]
    %v626 = vld [vmem:[%s620 + $0x28] sm:$0xff]
    %v627 = vld [vmem:[%s620 + $0x30] sm:$0xff]
    %v628 = vld [vmem:[%s620 + $0x38] sm:$0xff]
    %v629 = vld [vmem:[%s620 + $0x40] sm:$0xff]
    %v630 = vld [vmem:[%s620 + $0x48] sm:$0xff]
    %v631 = vld [vmem:[%s620 + $0x50] sm:$0xff]
    %v632 = vld [vmem:[%s620 + $0x58] sm:$0xff]
    %v633 = vld [vmem:[%s620 + $0x60] sm:$0xff]
    %v634 = vld [vmem:[%s620 + $0x68] sm:$0xff]
    %v635 = vld [vmem:[%s620 + $0x70] sm:$0xff]
    %v636 = vld [vmem:[%s620 + $0x78] sm:$0xff]
    %s637 = scalar_lea.vmem %s5, 1
    %v638 = vld [vmem:[%s637] sm:$0x1]
    %v640 = vlaneseq
    %v641 = vshrl.u32 %v640, 7
    %v642 = vsub.s32 0, %v641
    %v643 = vrot.slane %v638, %v642
    %645 = vmatprep.subr.mxu0 0.0
    %646 = vmatpush1.msra.mxu0 %v636
    %647 = vmatprep.subr.mxu0 0.0
    %648 = vmatpush1.msra.mxu0 %v635
    %649 = vmatprep.subr.mxu0 0.0
    %650 = vmatpush1.msra.mxu0 %v634
    %651 = vmatprep.subr.mxu0 0.0
    %652 = vmatpush1.msra.mxu0 %v633
    %653 = vmatprep.subr.mxu0 0.0
    %654 = vmatpush1.msra.mxu0 %v632
    %655 = vmatprep.subr.mxu0 0.0
    %656 = vmatpush1.msra.mxu0 %v631
    %657 = vmatprep.subr.mxu0 0.0
    %658 = vmatpush1.msra.mxu0 %v630
    %659 = vmatprep.subr.mxu0 0.0
    %660 = vmatpush1.msra.mxu0 %v629
    %661 = vmatprep.subr.mxu0 0.0
    %662 = vmatpush1.msra.mxu0 %v628
    %663 = vmatprep.subr.mxu0 0.0
    %664 = vmatpush1.msra.mxu0 %v627
    %665 = vmatprep.subr.mxu0 0.0
    %666 = vmatpush1.msra.mxu0 %v626
    %667 = vmatprep.subr.mxu0 0.0
    %668 = vmatpush1.msra.mxu0 %v625
    %669 = vmatprep.subr.mxu0 0.0
    %670 = vmatpush1.msra.mxu0 %v624
    %671 = vmatprep.subr.mxu0 0.0
    %672 = vmatpush1.msra.mxu0 %v623
    %673 = vmatprep.subr.mxu0 0.0
    %674 = vmatpush1.msra.mxu0 %v622
    %675 = vmatprep.subr.mxu0 0.0
    %676 = vmatpush1.msra.mxu0 %v621
    %677 = vmatprep.subr.mxu0 0.0
    %678 = vmatpush2.msra.mxu0 0.0
    %679 = vmatprep.subr.mxu0 0.0
    %680 = vmatpush2.msra.mxu0 0.0
    %681 = vmatprep.subr.mxu0 0.0
    %682 = vmatpush2.msra.mxu0 0.0
    %683 = vmatprep.subr.mxu0 0.0
    %684 = vmatpush2.msra.mxu0 0.0
    %685 = vmatprep.subr.mxu0 0.0
    %686 = vmatpush2.msra.mxu0 0.0
    %687 = vmatprep.subr.mxu0 0.0
    %688 = vmatpush2.msra.mxu0 0.0
    %689 = vmatprep.subr.mxu0 0.0
    %690 = vmatpush2.msra.mxu0 0.0
    %691 = vmatprep.subr.mxu0 0.0
    %692 = vmatpush2.msra.mxu0 0.0
    %693 = vmatprep.subr.mxu0 0.0
    %694 = vmatpush2.msra.mxu0 0.0
    %695 = vmatprep.subr.mxu0 0.0
    %696 = vmatpush2.msra.mxu0 0.0
    %697 = vmatprep.subr.mxu0 0.0
    %698 = vmatpush2.msra.mxu0 0.0
    %699 = vmatprep.subr.mxu0 0.0
    %700 = vmatpush2.msra.mxu0 0.0
    %701 = vmatprep.subr.mxu0 0.0
    %702 = vmatpush2.msra.mxu0 0.0
    %703 = vmatprep.subr.mxu0 0.0
    %704 = vmatpush2.msra.mxu0 0.0
    %705 = vmatprep.subr.mxu0 0.0
    %706 = vmatpush2.msra.mxu0 0.0
    %707 = vmatprep.subr.mxu0 0.0
    %708 = vmatpush2.msra.mxu0 0.0
    %709 = vmatprep.mubr.f32.mxu0 0.0
    %710 = vmatmul.mubr.f32.gmra.mxu0 %v616
    %v711 = vpop.f32.mrf.mxu0
    %v712 = vadd.f32 %v643, %v711
    %v713 = vpop.f32.mrf.mxu0
    %714 = vmatprep.mubr.f32.mxu0 0.0
    %715 = vmatmul.mubr.f32.gmra.mxu0 %v617
    %v716 = vpop.f32.mrf.mxu0
    %v717 = vadd.f32 %v643, %v716
    %v718 = vpop.f32.mrf.mxu0
    %719 = vmatprep.mubr.f32.mxu0 0.0
    %720 = vmatmul.mubr.f32.gmra.mxu0 %v618
    %v721 = vpop.f32.mrf.mxu0
    %v722 = vadd.f32 %v643, %v721
    %v723 = vpop.f32.mrf.mxu0
    %724 = vmatprep.mubr.f32.mxu0 0.0
    %725 = vmatmul.mubr.f32.gmra.mxu0 %v619
    %v726 = vpop.f32.mrf.mxu0
    %v727 = vadd.f32 %v643, %v726
    %v728 = vpop.f32.mrf.mxu0
    %729 = vdwg.mxu0
    %v730 = vmax.f32 %v712, 0.0
    %v731 = vmax.f32 %v717, 0.0
    %v732 = vmax.f32 %v722, 0.0
    %v733 = vmax.f32 %v727, 0.0
    %s734 = scalar_lea.vmem [#allocation10], 32
    %735 = vst [vmem:[%s734] sm:$0xff] %v730
    %736 = vst [vmem:[%s734 + $0x8] sm:$0xff] %v731
    %737 = vst [vmem:[%s734 + $0x10] sm:$0xff] %v732
    %738 = vst [vmem:[%s734 + $0x18] sm:$0xff] %v733
    // Predicated region
    $region42: #{tpu_custom_call.1} parent=1 // pred_check
      _
    $region43: #{tpu_custom_call.1} parent=1 // pred_check_branch
      %740 = sbr.rel (0) target = $region45
    $region44: #{tpu_custom_call.1} parent=1 // pred_region
      %s742 = ssub.s32 1024, 1024
      %743 = vsyncadd [#allocation4], %s742
      %s744 = sshll.u32 [#allocation10], 4
      %s745 = int_to_ptr.vmem [resolvable:$true] %s744
      %750 = dma.vmem_to_hbm [thread:$0]  %s745, 1024, %s6, [#allocation4], 128, 128, 8
    $region45: #{tpu_custom_call.1} parent=1 // pred_fallthru
      _
    // Predicated region
    $region46: #{tpu_custom_call.1} parent=1 // pred_check
      _
    $region47: #{tpu_custom_call.1} parent=1 // pred_check_branch
      %752 = sbr.rel (0) target = $region49
    $region48: #{tpu_custom_call.1} parent=1 // pred_region
      %753 = dma.done [#allocation4], 1024
    $region49: #{tpu_custom_call.1} parent=1 // pred_fallthru
      _
    %754 = vsyncpa [#allocation3], 1
    %755 = vsyncpa [#allocation6], 1
    %756 = vsyncpa [#allocation9], 1
    %757 = vsyncpa [#allocation4], 1

</llo_original>
